<compile_context>
chip_gen: v5e
topology: v5e:2x2
jax: 0.10.0
libtpu: 0.0.40
codegen_flags: <defaults>
</compile_context>

<pallas_src>
import jax
import jax.numpy as jnp
from jax.experimental import pallas as pl
from jax.experimental.pallas import tpu as pltpu

H_PAD = 128  # lane-aligned hidden width (original module uses H=100)


def _mlp_kernel(x_ref, w1_ref, b1_ref, w2_ref, b2_ref, o_ref):
    # Layer 1 on the MXU: (TB, F) @ (F, H_PAD); bias + ReLU on the VPU.
    h = jnp.dot(x_ref[...], w1_ref[...], preferred_element_type=jnp.float32)
    h = jnp.maximum(h + b1_ref[...], 0.0)
    # Layer 2: contract the hidden axis with the (1, H_PAD) weight row on the LEFT so the
    # result is a lane-dense (1, TB) row instead of a (TB, 1) masked-store column.
    z = jax.lax.dot_general(
        w2_ref[...], h,
        dimension_numbers=(((1,), (1,)), ((), ())),
        preferred_element_type=jnp.float32,
    )                                   # (1, TB)
    z = z + b2_ref[0, 0]                # scalar bias from SMEM
    o_ref[...] = jax.nn.sigmoid(z)[None].astype(o_ref.dtype)   # (1, 1, TB)


def _round_up(v, m):
    return ((v + m - 1) // m) * m


def _choose_tiling(B, F, tb):
    """Pick (grid_b, tb).  Few, large tiles: each grid step costs ~0.35us fixed overhead."""
    if tb is None:
        budget = 4 << 20  # target bytes for the double-buffered x stream
        tb_cap = max(8, ((budget // (2 * F * 4)) // 8) * 8)
    else:
        tb_cap = max(8, (tb // 8) * 8)
    if B <= 32:
        # Tiny batch: one full-array tile (block == full dims, no (8,128) alignment needed).
        return 1, B
    steps = max(2, pl.cdiv(B, tb_cap))
    steps += steps % 2                  # even step count -> both v7x TensorCores get work
    tb_eff = min(_round_up(pl.cdiv(B, steps), 8), tb_cap)
    grid_b = pl.cdiv(B, tb_eff)
    return grid_b, tb_eff


def two_layer_nn(x, w1, b1, w2, b2, *, tb=None):
    """Forward pass of TwoLayerNN.

    x : (B, F) f32
    w1: (H, F) f32   -- PyTorch nn.Linear(F, H).weight
    b1: (H,)   f32
    w2: (1, H) f32   -- PyTorch nn.Linear(H, 1).weight
    b2: (1,)   f32
    returns (B, 1) f32 = sigmoid(relu(x @ w1.T + b1) @ w2.T + b2)
    """
    B, F = x.shape
    H = w1.shape[0]
    assert H <= H_PAD

    # Weight preprocessing (zero-padding is exact: zero W1 columns + zero b1 pad produce
    # zero hidden units that contribute nothing through the zero-padded W2 entries).
    w1_t = jnp.zeros((F, H_PAD), jnp.float32).at[:, :H].set(w1.T.astype(jnp.float32))
    b1_row = jnp.zeros((1, H_PAD), jnp.float32).at[:, :H].set(b1.reshape(1, H).astype(jnp.float32))
    w2_row = jnp.zeros((1, H_PAD), jnp.float32).at[:, :H].set(w2.reshape(1, H).astype(jnp.float32))
    b2_s = b2.reshape(1, 1).astype(jnp.float32)

    grid_b, tbe = _choose_tiling(B, F, tb)
    n_rows = grid_b * tbe               # >= B; trailing partial block handled by Pallas

    cost = pl.CostEstimate(
        flops=int(2 * n_rows * F * H_PAD + 4 * n_rows * H_PAD),
        transcendentals=int(2 * n_rows),    # sigmoid ~ exp + recip per row
        bytes_accessed=int(B * F * 4 + F * H_PAD * 4 + 2 * H_PAD * 4 + 4 + n_rows * 4),
    )

    out = pl.pallas_call(
        _mlp_kernel,
        out_shape=jax.ShapeDtypeStruct((grid_b, 1, tbe), jnp.float32),
        grid_spec=pltpu.PrefetchScalarGridSpec(
            num_scalar_prefetch=0,
            grid=(grid_b,),
            in_specs=[
                # x: streamed per batch tile (double-buffered by the pipeline).
                pl.BlockSpec((tbe, F), lambda i: (i, 0)),
                # Weights / biases: constant index_map -> VMEM-resident across the grid.
                pl.BlockSpec((F, H_PAD), lambda i: (0, 0)),
                pl.BlockSpec((1, H_PAD), lambda i: (0, 0)),
                pl.BlockSpec((1, H_PAD), lambda i: (0, 0)),
                # b2: single scalar on the scalar path.
                pl.BlockSpec(memory_space=pltpu.MemorySpace.SMEM),
            ],
            out_specs=pl.BlockSpec((1, 1, tbe), lambda i: (i, 0, 0)),
        ),
        compiler_params=pltpu.CompilerParams(
            dimension_semantics=("parallel",),   # v7x: shard batch tiles across both TCs
        ),
        cost_estimate=cost,
    )(x.astype(jnp.float32), w1_t, b1_row, w2_row, b2_s)

    # Lane-dense (grid_b, 1, tbe) rows -> (B, 1); rows >= B (partial trailing tile) dropped.
    return out.reshape(n_rows)[:B].reshape(B, 1)


if __name__ == "__main__":
    # Small shapes implied by the module (F features -> 100 hidden -> 1 output).
    # B=100 also exercises the partial trailing batch tile (no pre-kernel padding copy).
    B, F, H = 100, 32, 100

    key = jax.random.PRNGKey(0)
    kx, kw1, kb1, kw2, kb2 = jax.random.split(key, 5)

    # PyTorch-style uniform(-1/sqrt(fan_in), +1/sqrt(fan_in)) init, deterministic.
    bound1 = 1.0 / jnp.sqrt(jnp.float32(F))
    bound2 = 1.0 / jnp.sqrt(jnp.float32(H))
    w1 = jax.random.uniform(kw1, (H, F), jnp.float32, -bound1, bound1)  # Linear(F,100).weight
    b1 = jax.random.uniform(kb1, (H,), jnp.float32, -bound1, bound1)    # Linear(F,100).bias
    w2 = jax.random.uniform(kw2, (1, H), jnp.float32, -bound2, bound2)  # Linear(100,1).weight
    b2 = jax.random.uniform(kb2, (1,), jnp.float32, -bound2, bound2)    # Linear(100,1).bias

    x = jax.random.normal(kx, (B, F), jnp.float32)

    out = jax.block_until_ready(two_layer_nn(x, w1, b1, w2, b2))

    # Pure-JAX reference (same math as the PyTorch forward), f32, highest matmul precision.
    hp = jax.lax.Precision.HIGHEST
    hidden = jnp.maximum(jnp.dot(x, w1.T, precision=hp) + b1, 0.0)
    ref = jax.nn.sigmoid(jnp.dot(hidden, w2.T, precision=hp) + b2)

    assert out.shape == (B, 1)
    assert jnp.allclose(out, ref, atol=1e-4, rtol=1e-4), float(jnp.max(jnp.abs(out - ref)))
    print("KERNEL_OK")
</pallas_src>

<mosaic_0001>
module attributes {stable_mosaic.version = 11 : i64} {
  func.func @_mlp_kernel(%arg0: i32, %arg1: memref<56x32xf32, #tpu.memory_space<vmem>>, %arg2: memref<32x128xf32, #tpu.memory_space<vmem>>, %arg3: memref<1x128xf32, #tpu.memory_space<vmem>>, %arg4: memref<1x128xf32, #tpu.memory_space<vmem>>, %arg5: memref<1x1xf32, #tpu.memory_space<smem>>, %arg6: memref<1x1x56xf32, #tpu.memory_space<vmem>>) attributes {dimension_semantics = [#tpu.dimension_semantics<parallel>], iteration_bounds = array<i64: 2>, scalar_prefetch = 0 : i64, scratch_operands = 0 : i64, tpu.core_type = #tpu.core_type<tc>, window_params = [{transform_indices = @transform_0, window_bounds = array<i64: 56, 32>}, {pipeline_mode = #tpu.pipeline_mode<synchronous>, transform_indices = @transform_1, window_bounds = array<i64: 32, 128>}, {pipeline_mode = #tpu.pipeline_mode<synchronous>, transform_indices = @transform_2, window_bounds = array<i64: 1, 128>}, {pipeline_mode = #tpu.pipeline_mode<synchronous>, transform_indices = @transform_3, window_bounds = array<i64: 1, 128>}, {transform_indices = @transform_4, window_bounds = array<i64: 1, 1>}, {transform_indices = @transform_5, window_bounds = array<i64: 1, 1, 56>}]} {
    %c0 = arith.constant 0 : index
    %c0_0 = arith.constant 0 : index
    %0 = vector.load %arg1[%c0, %c0_0] : memref<56x32xf32, #tpu.memory_space<vmem>>, vector<56x32xf32>
    %c0_1 = arith.constant 0 : index
    %c0_2 = arith.constant 0 : index
    %1 = vector.load %arg2[%c0_1, %c0_2] : memref<32x128xf32, #tpu.memory_space<vmem>>, vector<32x128xf32>
    %cst = arith.constant dense<0.000000e+00> : vector<56x128xf32>
    %2 = tpu.matmul %0, %1, %cst {dimension_numbers = #tpu.dot_dimension_numbers<[1], [0], [0], [1], [0, 0, 1, 1], [], []>} : vector<56x32xf32>, vector<32x128xf32>, vector<56x128xf32> -> vector<56x128xf32>
    %c0_3 = arith.constant 0 : index
    %c0_4 = arith.constant 0 : index
    %3 = vector.load %arg3[%c0_3, %c0_4] : memref<1x128xf32, #tpu.memory_space<vmem>>, vector<1x128xf32>
    %4 = vector.broadcast %3 : vector<1x128xf32> to vector<56x128xf32>
    %5 = arith.addf %2, %4 : vector<56x128xf32>
    %cst_5 = arith.constant 0.000000e+00 : f32
    %6 = vector.broadcast %cst_5 : f32 to vector<56x128xf32>
    %7 = arith.maximumf %5, %6 : vector<56x128xf32>
    %c0_6 = arith.constant 0 : index
    %c0_7 = arith.constant 0 : index
    %8 = vector.load %arg4[%c0_6, %c0_7] : memref<1x128xf32, #tpu.memory_space<vmem>>, vector<1x128xf32>
    %cst_8 = arith.constant dense<0.000000e+00> : vector<1x56xf32>
    %9 = tpu.matmul %8, %7, %cst_8 {dimension_numbers = #tpu.dot_dimension_numbers<[1], [1], [0], [0], [0, 0, 1, 0], [], []>} : vector<1x128xf32>, vector<56x128xf32>, vector<1x56xf32> -> vector<1x56xf32>
    %c0_9 = arith.constant 0 : index
    %c0_10 = arith.constant 0 : index
    %10 = memref.load %arg5[%c0_9, %c0_10] : memref<1x1xf32, #tpu.memory_space<smem>>
    %11 = vector.broadcast %10 : f32 to vector<1x56xf32>
    %12 = arith.addf %9, %11 : vector<1x56xf32>
    %13 = arith.negf %12 : vector<1x56xf32>
    %14 = math.exp %13 : vector<1x56xf32>
    %cst_11 = arith.constant 1.000000e+00 : f32
    %15 = vector.broadcast %cst_11 : f32 to vector<1x56xf32>
    %16 = arith.addf %15, %14 : vector<1x56xf32>
    %17 = arith.divf %15, %16 : vector<1x56xf32>
    %18 = vector.shape_cast %17 : vector<1x56xf32> to vector<1x1x56xf32>
    %c0_12 = arith.constant 0 : index
    %c0_13 = arith.constant 0 : index
    %c0_14 = arith.constant 0 : index
    %19 = vector.load %arg6[%c0_12, %c0_13, %c0_14] : memref<1x1x56xf32, #tpu.memory_space<vmem>>, vector<1x1x56xf32>
    tpu.vector_store %arg6[%c0_12, %c0_13, %c0_14], %18 {strides = array<i32>} : memref<1x1x56xf32, #tpu.memory_space<vmem>>, vector<1x1x56xf32>,
    return
  }
  func.func @transform_0(%arg0: i32) -> (i32, i32) {
    %c0_i32 = arith.constant 0 : i32
    %c0_i32_0 = arith.constant 0 : i32
    return %arg0, %c0_i32 : i32, i32
  }
  func.func @transform_1(%arg0: i32) -> (i32, i32) {
    %c0_i32 = arith.constant 0 : i32
    %c0_i32_0 = arith.constant 0 : i32
    %c0_i32_1 = arith.constant 0 : i32
    return %c0_i32, %c0_i32_0 : i32, i32
  }
  func.func @transform_2(%arg0: i32) -> (i32, i32) {
    %c0_i32 = arith.constant 0 : i32
    %c0_i32_0 = arith.constant 0 : i32
    %c0_i32_1 = arith.constant 0 : i32
    return %c0_i32, %c0_i32_0 : i32, i32
  }
  func.func @transform_3(%arg0: i32) -> (i32, i32) {
    %c0_i32 = arith.constant 0 : i32
    %c0_i32_0 = arith.constant 0 : i32
    %c0_i32_1 = arith.constant 0 : i32
    return %c0_i32, %c0_i32_0 : i32, i32
  }
  func.func @transform_4(%arg0: i32) -> (i32, i32) {
    %c0_i32 = arith.constant 0 : i32
    %c0_i32_0 = arith.constant 0 : i32
    %c0_i32_1 = arith.constant 0 : i32
    return %c0_i32, %c0_i32_0 : i32, i32
  }
  func.func @transform_5(%arg0: i32) -> (i32, i32, i32) {
    %c0_i32 = arith.constant 0 : i32
    %c0_i32_0 = arith.constant 0 : i32
    %c0_i32_1 = arith.constant 0 : i32
    return %arg0, %c0_i32, %c0_i32_0 : i32, i32, i32
  }
}

</mosaic_0001>

<llo_original>
// kernel: tpu_custom_call.1
$region0: #{tpu_custom_call.1}
  #allocation0 [shape = 'u32[]', space=smem, size = 0x4, offset = 0x4, fixed_abs, tag = 'smem constant byte address 0x4 - core index']
  #allocation1 [shape = 'u32[72,128]{1,0:T(1,128)}', space=vmem, size = 0x9000, scoped, tag = 'internal scratch']
  #allocation2 [shape = 'f32[1,1]{1,0:T(1,128)S(6)}', space=smem, size = 0x200, scoped, tag = 'scoped memory for tpu_custom_call.1']
  %s0 = inlined_call_operand.vmem [shape: f32[100,32], index: 0, kind: input, shape index: {}]
  %s1 = inlined_call_operand.vmem [shape: f32[32,128], index: 1, kind: input, shape index: {}]
  %s2 = inlined_call_operand.vmem [shape: f32[1,128], index: 2, kind: input, shape index: {}]
  %s3 = inlined_call_operand.vmem [shape: f32[1,128], index: 3, kind: input, shape index: {}]
  %s4 = inlined_call_operand.<no memory space> [shape: f32[1,1], index: 4, kind: input, shape index: {}]
  %s5 = inlined_call_operand.hbm [shape: f32[2,1,56], index: 5, kind: output, shape index: {}]
  %s6 = sld [smem:[#allocation0]]
  $region53: #{tpu_custom_call.1} parent=0
    _
  %s8 = ssub.s32 1, %s6
  %s9 = scalar_select 0, %s8, %s6
  %10 = sst [smem:[#allocation2]] %s4
  $region1: #{tpu_custom_call.1} parent=0
    #allocation3 [shape = 'u8[1024]{0}', space=vmem, size = 0x400, scoped, tag = 'output window, operand 0']
    #allocation4 [shape = 's32[2]{0}', space=sflag, size = 0x8, scoped, tag = 'scoped memory for tpu_custom_call.1']
    %11 = vsyncpa [#allocation4], 0
    %s12 = scalar_lea.sflag [#allocation4], 1
    %13 = vsyncpa %s12, 0
    loop: start=0, step=1, limit=4
    $region2: #{tpu_custom_call.1} parent=1 // loop_pre_header
      _
    $region3: #{tpu_custom_call.1} parent=1 // loop_header
      %s15 = sphi 0, %s19
      %p16 = scmp.ge.s32.totalorder %s15, 4
      %s25 = sphi 0, %s27
      %s28 = sphi 0, %s25
      %s29 = sphi 0, %s28
      %s45 = sphi 0, %s29
      %s49 = sphi 0, %s49
      %s51 = sphi 0, %s49
      %s52 = sphi 0, %s51
      %s66 = sphi 0, %s52
      %s70 = sphi 0, %s70
      %s72 = sphi 0, %s70
      %s73 = sphi 0, %s72
      %s87 = sphi 0, %s73
      %s91 = sphi 0, %s91
      %s93 = sphi 0, %s91
      %s94 = sphi 0, %s93
      %s108 = sphi 0, %s94
      %s112 = sphi 0, %s112
      %s114 = sphi 0, %s112
      %s115 = sphi 0, %s114
      %s129 = sphi 0, %s115
      %s135 = sphi 0, %s137
      %s138 = sphi 0, %s135
      %s139 = sphi 0, %s138
      %s155 = sphi 0, %s139
    $region4: #{tpu_custom_call.1} parent=1 // loop_header_branch
      %18 = sbr.rel (%p16) target = $region8
    $region5: #{tpu_custom_call.1} parent=1 // loop_body
      %s20 = ssub.s32 %s15, 1
      %s21 = ssub.s32 %s15, 2
      %s22 = sadd.s32 %s15, 1
      %s23 = ssub.s32 %s15, %s22
      %p24 = scmp.eq.s32.totalorder %s23, 0
      %s26 = sadd.s32 %s25, 1
      %s27 = scalar_select %p24, %s25, %s26
      %p30 = pneg %p24
      %p31 = scmp.eq.s32.totalorder %s15, 1
      %p32 = por %p30, %p31
      %p33 = scmp.ne.s32.totalorder %s25, %s28
      %p34 = scmp.eq.s32.totalorder %s15, 0
      %p35 = por %p33, %p34
      %p36 = scmp.ne.s32.totalorder %s25, %s28
      %p37 = scmp.eq.s32.totalorder %s20, 1
      %p38 = por %p36, %p37
      %p39 = scmp.ne.s32.totalorder %s28, %s29
      %p40 = scmp.eq.s32.totalorder %s20, 0
      %p41 = por %p39, %p40
      %p42 = scmp.ne.s32.totalorder %s28, %s29
      %p43 = scmp.eq.s32.totalorder %s21, 1
      %p44 = por %p42, %p43
      %p46 = scmp.ne.s32.totalorder %s29, %s45
      %p47 = scmp.eq.s32.totalorder %s21, 0
      %p48 = por %p46, %p47
      %s50 = sadd.s32 %s49, 1
      %p53 = scmp.eq.s32.totalorder %s15, 1
      %p54 = scmp.ne.s32.totalorder %s49, %s51
      %p55 = scmp.eq.s32.totalorder %s15, 0
      %p56 = por %p54, %p55
      %p57 = scmp.ne.s32.totalorder %s49, %s51
      %p58 = scmp.eq.s32.totalorder %s20, 1
      %p59 = por %p57, %p58
      %p60 = scmp.ne.s32.totalorder %s51, %s52
      %p61 = scmp.eq.s32.totalorder %s20, 0
      %p62 = por %p60, %p61
      %p63 = scmp.ne.s32.totalorder %s51, %s52
      %p64 = scmp.eq.s32.totalorder %s21, 1
      %p65 = por %p63, %p64
      %p67 = scmp.ne.s32.totalorder %s52, %s66
      %p68 = scmp.eq.s32.totalorder %s21, 0
      %p69 = por %p67, %p68
      %s71 = sadd.s32 %s70, 1
      %p74 = scmp.eq.s32.totalorder %s15, 1
      %p75 = scmp.ne.s32.totalorder %s70, %s72
      %p76 = scmp.eq.s32.totalorder %s15, 0
      %p77 = por %p75, %p76
      %p78 = scmp.ne.s32.totalorder %s70, %s72
      %p79 = scmp.eq.s32.totalorder %s20, 1
      %p80 = por %p78, %p79
      %p81 = scmp.ne.s32.totalorder %s72, %s73
      %p82 = scmp.eq.s32.totalorder %s20, 0
      %p83 = por %p81, %p82
      %p84 = scmp.ne.s32.totalorder %s72, %s73
      %p85 = scmp.eq.s32.totalorder %s21, 1
      %p86 = por %p84, %p85
      %p88 = scmp.ne.s32.totalorder %s73, %s87
      %p89 = scmp.eq.s32.totalorder %s21, 0
      %p90 = por %p88, %p89
      %s92 = sadd.s32 %s91, 1
      %p95 = scmp.eq.s32.totalorder %s15, 1
      %p96 = scmp.ne.s32.totalorder %s91, %s93
      %p97 = scmp.eq.s32.totalorder %s15, 0
      %p98 = por %p96, %p97
      %p99 = scmp.ne.s32.totalorder %s91, %s93
      %p100 = scmp.eq.s32.totalorder %s20, 1
      %p101 = por %p99, %p100
      %p102 = scmp.ne.s32.totalorder %s93, %s94
      %p103 = scmp.eq.s32.totalorder %s20, 0
      %p104 = por %p102, %p103
      %p105 = scmp.ne.s32.totalorder %s93, %s94
      %p106 = scmp.eq.s32.totalorder %s21, 1
      %p107 = por %p105, %p106
      %p109 = scmp.ne.s32.totalorder %s94, %s108
      %p110 = scmp.eq.s32.totalorder %s21, 0
      %p111 = por %p109, %p110
      %s113 = sadd.s32 %s112, 1
      %p116 = scmp.eq.s32.totalorder %s15, 1
      %p117 = scmp.ne.s32.totalorder %s112, %s114
      %p118 = scmp.eq.s32.totalorder %s15, 0
      %p119 = por %p117, %p118
      %p120 = scmp.ne.s32.totalorder %s112, %s114
      %p121 = scmp.eq.s32.totalorder %s20, 1
      %p122 = por %p120, %p121
      %p123 = scmp.ne.s32.totalorder %s114, %s115
      %p124 = scmp.eq.s32.totalorder %s20, 0
      %p125 = por %p123, %p124
      %p126 = scmp.ne.s32.totalorder %s114, %s115
      %p127 = scmp.eq.s32.totalorder %s21, 1
      %p128 = por %p126, %p127
      %p130 = scmp.ne.s32.totalorder %s115, %s129
      %p131 = scmp.eq.s32.totalorder %s21, 0
      %p132 = por %p130, %p131
      %s133 = ssub.s32 %s15, %s22
      %p134 = scmp.eq.s32.totalorder %s133, 0
      %s136 = sadd.s32 %s135, 1
      %s137 = scalar_select %p134, %s135, %s136
      %p140 = pneg %p134
      %p141 = scmp.eq.s32.totalorder %s15, 1
      %p142 = por %p140, %p141
      %p143 = scmp.ne.s32.totalorder %s135, %s138
      %p144 = scmp.eq.s32.totalorder %s15, 0
      %p145 = por %p143, %p144
      %p146 = scmp.ne.s32.totalorder %s135, %s138
      %p147 = scmp.eq.s32.totalorder %s20, 1
      %p148 = por %p146, %p147
      %p149 = scmp.ne.s32.totalorder %s138, %s139
      %p150 = scmp.eq.s32.totalorder %s20, 0
      %p151 = por %p149, %p150
      %p152 = scmp.ne.s32.totalorder %s138, %s139
      %p153 = scmp.eq.s32.totalorder %s21, 1
      %p154 = por %p152, %p153
      %p156 = scmp.ne.s32.totalorder %s139, %s155
      %p157 = scmp.eq.s32.totalorder %s21, 0
      %p158 = por %p156, %p157
      %p159 = scmp.le.s32.totalorder 1, %s15
      %p160 = scmp.lt.s32.totalorder %s15, 3
      %p161 = pnand %p159, %p160
      %p162 = pneg %p161
      // Predicated region
      $region9: #{tpu_custom_call.1} parent=5 // pred_check
        _
      $region10: #{tpu_custom_call.1} parent=5 // pred_check_branch
        %164 = sbr.rel (%p161) target = $region12
      $region11: #{tpu_custom_call.1} parent=5 // pred_region
        %s165 = ssub.s32 %s15, 1
        // Predicated region
        $region13: #{tpu_custom_call.1} parent=11 // pred_check
          %p166 = pneg %p62
        $region14: #{tpu_custom_call.1} parent=11 // pred_check_branch
          %168 = sbr.rel (%p166) target = $region16
        $region15: #{tpu_custom_call.1} parent=11 // pred_region
          _
        $region16: #{tpu_custom_call.1} parent=11 // pred_fallthru
          _
        // Predicated region
        $region17: #{tpu_custom_call.1} parent=11 // pred_check
          %p169 = pneg %p83
        $region18: #{tpu_custom_call.1} parent=11 // pred_check_branch
          %171 = sbr.rel (%p169) target = $region20
        $region19: #{tpu_custom_call.1} parent=11 // pred_region
          _
        $region20: #{tpu_custom_call.1} parent=11 // pred_fallthru
          _
        // Predicated region
        $region21: #{tpu_custom_call.1} parent=11 // pred_check
          %p172 = pneg %p104
        $region22: #{tpu_custom_call.1} parent=11 // pred_check_branch
          %174 = sbr.rel (%p172) target = $region24
        $region23: #{tpu_custom_call.1} parent=11 // pred_region
          _
        $region24: #{tpu_custom_call.1} parent=11 // pred_fallthru
          _
        // Predicated region
        $region25: #{tpu_custom_call.1} parent=11 // pred_check
          %p175 = pneg %p125
        $region26: #{tpu_custom_call.1} parent=11 // pred_check_branch
          %177 = sbr.rel (%p175) target = $region28
        $region27: #{tpu_custom_call.1} parent=11 // pred_region
          _
        $region28: #{tpu_custom_call.1} parent=11 // pred_fallthru
          _
      $region12: #{tpu_custom_call.1} parent=5 // pred_fallthru
        _
      %p178 = scmp.lt.s32.totalorder %s15, 2
      // Predicated region
      $region29: #{tpu_custom_call.1} parent=5 // pred_check
        %p179 = pneg %p178
      $region30: #{tpu_custom_call.1} parent=5 // pred_check_branch
        %181 = sbr.rel (%p179) target = $region32
      $region31: #{tpu_custom_call.1} parent=5 // pred_region
        // Predicated region
        $region33: #{tpu_custom_call.1} parent=31 // pred_check
          %p182 = pneg %p35
        $region34: #{tpu_custom_call.1} parent=31 // pred_check_branch
          %184 = sbr.rel (%p182) target = $region36
        $region35: #{tpu_custom_call.1} parent=31 // pred_region
          %s185 = smul.u32 7, %s15
          %s186 = ssub.s32 13, %s185
          %p187 = scmp.lt.s32.totalorder %s186, 7
          %s188 = scalar_select %p187, %s186, 7
          %s189 = smul.u32 8, %s188
          %p190 = scmp.lt.s32.totalorder %s185, 12
          %s191 = scalar_select %p190, %s185, 12
          %s192 = smul.addr %s191, 8
          %s193 = scalar_lea.vmem %s0, %s192
          %s194 = smul.u32 7, %s15
          %s195 = ssub.s32 13, %s194
          %p196 = scmp.lt.s32.totalorder %s195, 7
          %s197 = scalar_select %p196, %s195, 7
          %s198 = smul.u32 8, %s197
        $region36: #{tpu_custom_call.1} parent=31 // pred_fallthru
          _
      $region32: #{tpu_custom_call.1} parent=5 // pred_fallthru
        _
      %p199 = scmp.le.s32.totalorder 1, %s15
      %p200 = scmp.lt.s32.totalorder %s15, 3
      %p201 = pnand %p199, %p200
      %p202 = pneg %p201
      // Predicated region
      $region37: #{tpu_custom_call.1} parent=5 // pred_check
        _
      $region38: #{tpu_custom_call.1} parent=5 // pred_check_branch
        %204 = sbr.rel (%p201) target = $region40
      $region39: #{tpu_custom_call.1} parent=5 // pred_region
        %s205 = ssub.s32 %s15, 1
        %s206 = smul.u32 7, %s20
        %s207 = ssub.s32 13, %s206
        %p208 = scmp.lt.s32.totalorder %s207, 7
        %s209 = scalar_select %p208, %s207, 7
        %s210 = smul.u32 8, %s209
        %p211 = scmp.lt.s32.totalorder %s206, 12
        %s212 = scalar_select %p211, %s206, 12
        %s213 = smul.addr %s212, 8
        %s214 = scalar_lea.vmem %s0, %s213
        %p215 = pneg %p41
        %p216 = pneg %p38
        %p217 = pneg %p62
        %p218 = pneg %p59
        %p219 = pneg %p83
        %p220 = pneg %p80
        %p221 = pneg %p104
        %p222 = pneg %p101
        %p223 = pneg %p125
        %p224 = pneg %p122
        %p225 = pneg %p151
        %p226 = pneg %p148
        %s227 = sand.u32 %s138, 1
        %s228 = scalar_lea.sflag [#allocation4], %s227
        %s229 = sand.u32 %s138, 1
        %s230 = scalar_lea.vmem [#allocation3], %s229
        %s231 = smul.u32 7, %s20
        %s232 = ssub.s32 13, %s231
        %p233 = scmp.lt.s32.totalorder %s232, 7
        %s234 = scalar_select %p233, %s232, 7
        %s235 = smul.u32 8, %s234
        %p236 = scmp.lt.s32.totalorder %s231, 12
        %s237 = scalar_select %p236, %s231, 12
        %s238 = smul.addr %s237, 8
        %s239 = scalar_lea.vmem %s0, %s238
        %s240 = smul.u32 7, %s20
        %s241 = ssub.s32 13, %s240
        %p242 = scmp.lt.s32.totalorder %s241, 7
        %s243 = scalar_select %p242, %s241, 7
        %s244 = smul.u32 8, %s243
        %v245 = vld [vmem:[%s239] sm:$0xff]
        %v246 = vld [vmem:[%s239 + $0x8] sm:$0xff]
        %v247 = vld [vmem:[%s239 + $0x10] sm:$0xff]
        %v248 = vld [vmem:[%s239 + $0x18] sm:$0xff]
        %v249 = vld [vmem:[%s239 + $0x20] sm:$0xff]
        %v250 = vld [vmem:[%s239 + $0x28] sm:$0xff]
        %v251 = vld [vmem:[%s239 + $0x30] sm:$0xff]
        %v252 = vld [vmem:[%s1] sm:$0xff]
        %v253 = vld [vmem:[%s1 + $0x8] sm:$0xff]
        %v254 = vld [vmem:[%s1 + $0x10] sm:$0xff]
        %v255 = vld [vmem:[%s1 + $0x18] sm:$0xff]
        %v256 = vld [vmem:[%s2] sm:$0x1]
        %v258 = vperm.slane %v256, 0
        %vm260 = vcmask 261120
        %v262 = vsel %vm260, %v245, 0
        %v265 = vsel %vm260, %v246, 0
        %v268 = vsel %vm260, %v247, 0
        %v271 = vsel %vm260, %v248, 0
        %v274 = vsel %vm260, %v249, 0
        %v277 = vsel %vm260, %v250, 0
        %v280 = vsel %vm260, %v251, 0
        %282 = vmatpush.msra.mxu0 0.0
        %283 = vmatpush.msra.mxu0 0.0
        %284 = vmatpush.msra.mxu0 0.0
        %285 = vmatpush.msra.mxu0 0.0
        %286 = vmatpush.msra.mxu0 0.0
        %287 = vmatpush.msra.mxu0 0.0
        %288 = vmatpush.msra.mxu0 0.0
        %289 = vmatpush.msra.mxu0 0.0
        %290 = vmatpush.msra.mxu0 0.0
        %291 = vmatpush.msra.mxu0 0.0
        %292 = vmatpush.msra.mxu0 0.0
        %293 = vmatpush.msra.mxu0 0.0
        %294 = vmatpush.msra.mxu0 %v255
        %295 = vmatpush.msra.mxu0 %v254
        %296 = vmatpush.msra.mxu0 %v253
        %297 = vmatpush.msra.mxu0 %v252
        %298 = vmatmul.f32.gmra.mxu0 %v262
        %v299 = vpop.f32.mrf.mxu0
        %v300 = vadd.f32 %v258, %v299
        %301 = vmatmul.f32.gmra.mxu0 %v265
        %v302 = vpop.f32.mrf.mxu0
        %v303 = vadd.f32 %v258, %v302
        %304 = vmatmul.f32.gmra.mxu0 %v268
        %v305 = vpop.f32.mrf.mxu0
        %v306 = vadd.f32 %v258, %v305
        %307 = vmatmul.f32.gmra.mxu0 %v271
        %v308 = vpop.f32.mrf.mxu0
        %v309 = vadd.f32 %v258, %v308
        %310 = vmatmul.f32.gmra.mxu0 %v274
        %v311 = vpop.f32.mrf.mxu0
        %v312 = vadd.f32 %v258, %v311
        %313 = vmatmul.f32.gmra.mxu0 %v277
        %v314 = vpop.f32.mrf.mxu0
        %v315 = vadd.f32 %v258, %v314
        %316 = vmatmul.f32.gmra.mxu0 %v280
        %v317 = vpop.f32.mrf.mxu0
        %v318 = vadd.f32 %v258, %v317
        %319 = vdwg.mxu0
        %v320 = vmax.f32 %v300, 0.0
        %v321 = vmax.f32 %v303, 0.0
        %v322 = vmax.f32 %v306, 0.0
        %v323 = vmax.f32 %v309, 0.0
        %v324 = vmax.f32 %v312, 0.0
        %v325 = vmax.f32 %v315, 0.0
        %v326 = vmax.f32 %v318, 0.0
        %v327 = vld [vmem:[%s3] sm:$0x1]
        %s328 = sld [smem:[#allocation2]]
        %v329 = vstv %s328
        %330 = vmatpush.xpose.msra.mxu0 0.0
        %331 = vmatpush.xpose.msra.mxu0 0.0
        %332 = vmatpush.xpose.msra.mxu0 0.0
        %333 = vmatpush.xpose.msra.mxu0 0.0
        %334 = vmatpush.xpose.msra.mxu0 0.0
        %335 = vmatpush.xpose.msra.mxu0 0.0
        %336 = vmatpush.xpose.msra.mxu0 0.0
        %337 = vmatpush.xpose.msra.mxu0 0.0
        %338 = vmatpush.xpose.msra.mxu0 0.0
        %339 = vmatpush.xpose.msra.mxu0 %v326
        %340 = vmatpush.xpose.msra.mxu0 %v325
        %341 = vmatpush.xpose.msra.mxu0 %v324
        %342 = vmatpush.xpose.msra.mxu0 %v323
        %343 = vmatpush.xpose.msra.mxu0 %v322
        %344 = vmatpush.xpose.msra.mxu0 %v321
        %345 = vmatpush.xpose.msra.mxu0 %v320
        %346 = vmatmul.f32.gmra.mxu0 %v327
        %v347 = vpop.f32.mrf.mxu0
        %v348 = vadd.f32 %v329, %v347
        %349 = vdwg.mxu0
        %v350 = vxor.u32 %v348, 2147483648
        %v351 = vmul.f32 %v350, 1.442695
        %v352 = vpow.pop %v351
        %v353 = vadd.f32 %v352, 1.0
        %v354 = vrcp.pop %v353
        %v355 = vmul.f32 %v353, %v354
        %v356 = vsub.f32 1.0, %v355
        %v357 = vmul.f32 %v354, %v356
        %v358 = vadd.f32 %v354, %v357
        %vm359 = vweird.f32 %v353
        %vm360 = vweird.f32 %v354
        %vm361 = vmor %vm359, %vm360
        %v362 = vsel %vm361, %v354, %v358
        %v363 = vand.u32 2147483647, %v353
        %vm364 = vcmp.eq.f32.partialorder %v363, 8.507059e+37
        %v365 = vand.u32 %v353, 2147483648
        %v366 = vor.u32 1.1754944e-38, %v365
        %v367 = vsel %vm364, %v366, %v362
        %v368 = vmul.f32 1.0, %v367
        %vm369 = vcmask 450560
        %370 = vst.msk [vmem:[%s230] sm:$0x1] %vm369, %v368
        %s371 = sand.u32 %s138, 1
        %s372 = scalar_lea.sflag [#allocation4], %s371
        %s373 = sand.u32 %s138, 1
        %s374 = scalar_lea.vmem [#allocation3], %s373
        // Predicated region
        $region41: #{tpu_custom_call.1} parent=39 // pred_check
          %p375 = pneg %p148
        $region42: #{tpu_custom_call.1} parent=39 // pred_check_branch
          %377 = sbr.rel (%p375) target = $region44
        $region43: #{tpu_custom_call.1} parent=39 // pred_region
          %379 = vsyncadd %s372, 0
          %s380 = scalar_lea.hbm %s5, %s20
          %s382 = sshll.u32 %s374, 4
          %s383 = int_to_ptr.vmem [resolvable:$true] %s382
          %s384 = sshll.u32 %s380, 4
          %s385 = int_to_ptr.hbm [resolvable:$true] %s384
          %387 = dma.vmem_to_hbm [thread:$0]  %s383, 16, %s385, %s372
        $region44: #{tpu_custom_call.1} parent=39 // pred_fallthru
          _
      $region40: #{tpu_custom_call.1} parent=5 // pred_fallthru
        _
      %p388 = scmp.le.s32.totalorder 2, %s15
      // Predicated region
      $region45: #{tpu_custom_call.1} parent=5 // pred_check
        %p389 = pneg %p388
      $region46: #{tpu_custom_call.1} parent=5 // pred_check_branch
        %391 = sbr.rel (%p389) target = $region48
      $region47: #{tpu_custom_call.1} parent=5 // pred_region
        %s392 = ssub.s32 %s15, 2
        // Predicated region
        $region49: #{tpu_custom_call.1} parent=47 // pred_check
          %p393 = pneg %p154
        $region50: #{tpu_custom_call.1} parent=47 // pred_check_branch
          %395 = sbr.rel (%p393) target = $region52
        $region51: #{tpu_custom_call.1} parent=47 // pred_region
          %s396 = sand.u32 %s139, 1
          %s397 = scalar_lea.sflag [#allocation4], %s396
          %s398 = sand.u32 %s139, 1
          %s399 = scalar_lea.vmem [#allocation3], %s398
          %401 = dma.done %s397, 16
        $region52: #{tpu_custom_call.1} parent=47 // pred_fallthru
          _
      $region48: #{tpu_custom_call.1} parent=5 // pred_fallthru
        _
    $region6: #{tpu_custom_call.1} parent=1 // loop_footer
      %s19 = sadd.s32 1, %s15
    $region7: #{tpu_custom_call.1} parent=1 // loop_footer_branch
      %14 = sbr.rel target = $region3
    $region8: #{tpu_custom_call.1} parent=1 // loop_exit
      _
    %402 = vsyncpa [#allocation4], 1
    %s403 = scalar_lea.sflag [#allocation4], 1
    %404 = vsyncpa %s403, 1

</llo_original>
